<compile_context>
chip_gen: v7x
topology: tpu7x:2x2x1
jax: 0.10.0
libtpu: 0.0.40
codegen_flags: <defaults>
</compile_context>

<pallas_src>
import jax
import jax.numpy as jnp
from jax.experimental import pallas as pl
from jax.experimental.pallas import tpu as pltpu


_LANES = 128
# Below this many first-token activations (B*H), a fused XLA dot wins.
_MIN_PALLAS_ELEMS = 64 * 1024


def _round_up(x, m):
    return (x + m - 1) // m * m


def _distinguish_kernel(x_ref, wp_ref, bp_ref, wc_ref, bc_ref, o_ref):
    # x_ref : [TB, H]      first-token activations for one batch tile
    # wp_ref: [H, H]       pool weight (in, out)       -- VMEM resident
    # bp_ref: [1, H]  f32  pool bias
    # wc_ref: [H, Cp]      classifier weight (in, out) -- VMEM resident
    # bc_ref: [1, Cp] f32  classifier bias (zero-padded to Cp)
    # o_ref : [TB, Cp]     padded logits (lane-dense store)
    #
    # Operands are cast to the weight dtype so bf16 weights drive the MXU at
    # full rate; accumulation stays f32 via preferred_element_type.
    x = x_ref[...].astype(wp_ref.dtype)
    pooled = jnp.dot(x, wp_ref[...], preferred_element_type=jnp.float32)
    # Bias add + tanh in f32 (VPU/EUP epilogue; correct on v5e as well).
    pooled = jnp.tanh(pooled + bp_ref[...])
    # TODO(synk): Dropout omitted (inference semantics -> identity).
    logits = jnp.dot(pooled.astype(wc_ref.dtype), wc_ref[...],
                     preferred_element_type=jnp.float32)
    o_ref[...] = (logits + bc_ref[...]).astype(o_ref.dtype)


def distinguish_forward_pallas(distinguish_input, w_pool, b_pool, w_cls, b_cls,
                               *, block_b=256, out_dtype=None):
    """Fused pool-matmul + bias + tanh + classifier-matmul + bias.

    distinguish_input: [B, S, H]; w_pool: [H, H] (in,out); w_cls: [H, C].
    Returns logits [B, C].
    """
    B, S, H = distinguish_input.shape
    C = w_cls.shape[1]
    if out_dtype is None:
        out_dtype = distinguish_input.dtype

    # Lane-dense output: pad classifier columns to a 128-multiple so every
    # output store is a full-lane (unmasked) vst; slice back outside.
    C_pad = _round_up(C, _LANES)
    if C_pad != C:
        w_cls = jnp.pad(w_cls, ((0, 0), (0, C_pad - C)))
        b_cls = jnp.pad(b_cls, (0, C_pad - C))
    b_pool2 = b_pool.astype(jnp.float32).reshape(1, H)
    b_cls2 = b_cls.astype(jnp.float32).reshape(1, C_pad)

    # Batch tiling; weights held resident, x/out tiles double-buffered.
    TB = min(block_b, B)
    grid = (pl.cdiv(B, TB),)

    if H % _LANES == 0:
        # Fold the CLS-token slice into the BlockSpec: viewed as [B, S*H],
        # token 0 occupies the first H (128-aligned) lanes of each row, so
        # the pipeline DMAs only those columns straight from HBM.
        x_arr = distinguish_input.reshape(B, S * H)
    else:
        # TODO(synk): non-128-aligned hidden size -> slice in XLA so the
        # block's last dim equals the full array dim (layout constraint).
        x_arr = distinguish_input[:, 0, :]
    x_spec = pl.BlockSpec((TB, H), lambda i: (i, 0))

    itemsize = distinguish_input.dtype.itemsize
    w_itemsize = w_pool.dtype.itemsize
    cost = pl.CostEstimate(
        flops=2 * B * H * (H + C_pad),
        transcendentals=B * H,
        bytes_accessed=(B * H * itemsize
                        + (H * H + H * C_pad) * w_itemsize
                        + (H + C_pad) * 4
                        + B * C_pad * jnp.dtype(out_dtype).itemsize),
    )

    out_padded = pl.pallas_call(
        _distinguish_kernel,
        out_shape=jax.ShapeDtypeStruct((B, C_pad), out_dtype),
        grid_spec=pltpu.PrefetchScalarGridSpec(
            num_scalar_prefetch=0,
            grid=grid,
            in_specs=[
                x_spec,                                        # x (tiled)
                pl.BlockSpec((H, H), lambda i: (0, 0)),        # W_pool resident
                pl.BlockSpec((1, H), lambda i: (0, 0)),        # b_pool
                pl.BlockSpec((H, C_pad), lambda i: (0, 0)),    # W_cls resident
                pl.BlockSpec((1, C_pad), lambda i: (0, 0)),    # b_cls
            ],
            out_specs=pl.BlockSpec((TB, C_pad), lambda i: (i, 0)),
        ),
        compiler_params=pltpu.CompilerParams(
            # Batch tiles are independent -> shardable over the 2 TCs on v7x.
            dimension_semantics=("parallel",)),
        cost_estimate=cost,
    )(x_arr, w_pool, b_pool2, w_cls, b_cls2)

    return out_padded[:, :C]


def reference_forward(distinguish_input, w_pool, b_pool, w_cls, b_cls):
    """Pure-JAX (f32, highest precision) reference matching the PyTorch forward."""
    x = distinguish_input[:, 0, :].astype(jnp.float32)
    pooled = jnp.tanh(
        jnp.dot(x, w_pool.astype(jnp.float32),
                precision=jax.lax.Precision.HIGHEST)
        + b_pool.astype(jnp.float32))
    return (jnp.dot(pooled, w_cls.astype(jnp.float32),
                    precision=jax.lax.Precision.HIGHEST)
            + b_cls.astype(jnp.float32))


def distinguish_forward(distinguish_input, w_pool, b_pool, w_cls, b_cls,
                        *, force_pallas=False, block_b=256, out_dtype=None):
    """Dispatcher: fused XLA at tiny sizes, Pallas kernel otherwise."""
    B, S, H = distinguish_input.shape
    if out_dtype is None:
        out_dtype = distinguish_input.dtype
    if not force_pallas and B * H < _MIN_PALLAS_ELEMS:
        # At tiny sizes the kernel is pure launch/step overhead; let XLA fuse.
        return reference_forward(distinguish_input, w_pool, b_pool,
                                 w_cls, b_cls).astype(out_dtype)
    return distinguish_forward_pallas(distinguish_input, w_pool, b_pool,
                                      w_cls, b_cls, block_b=block_b,
                                      out_dtype=out_dtype)


if __name__ == "__main__":
    key = jax.random.PRNGKey(0)
    k_x, k_wp, k_bp, k_wc, k_bc = jax.random.split(key, 5)

    # Small BERT-ish shapes: batch=16, seq=8, bert_size=128, dis_class_num=4.
    B, S, H, C = 16, 8, 128, 4
    distinguish_input = jax.random.normal(k_x, (B, S, H), dtype=jnp.float32)
    w_pool = jax.random.normal(k_wp, (H, H), dtype=jnp.float32) * 0.05
    b_pool = jax.random.normal(k_bp, (H,), dtype=jnp.float32) * 0.05
    w_cls = jax.random.normal(k_wc, (H, C), dtype=jnp.float32) * 0.05
    b_cls = jax.random.normal(k_bc, (C,), dtype=jnp.float32) * 0.05

    ref = reference_forward(distinguish_input, w_pool, b_pool, w_cls, b_cls)

    # 1) f32 Pallas path: block_b=8 -> 2-step "parallel" batch grid, folded
    #    CLS slice, resident weights, lane-dense (padded-to-128) output.
    logits = distinguish_forward(distinguish_input, w_pool, b_pool, w_cls,
                                 b_cls, force_pallas=True, block_b=8)
    logits = jax.block_until_ready(logits)
    assert logits.shape == (B, C)
    assert jnp.allclose(logits, ref, atol=1e-4, rtol=1e-4), "f32 mismatch"

    # 2) bf16-weight path: MXU sees bf16 operands, f32 accumulate + epilogue.
    logits_bf16 = distinguish_forward(
        distinguish_input, w_pool.astype(jnp.bfloat16), b_pool,
        w_cls.astype(jnp.bfloat16), b_cls,
        force_pallas=True, block_b=8, out_dtype=jnp.float32)
    logits_bf16 = jax.block_until_ready(logits_bf16)
    assert jnp.allclose(logits_bf16, ref, atol=5e-2, rtol=5e-2), "bf16 mismatch"

    # 3) Non-128-aligned hidden size exercises the XLA-slice fallback path.
    Hs, Bs = 32, 2
    xs = jax.random.normal(k_x, (Bs, S, Hs), dtype=jnp.float32)
    wps = jax.random.normal(k_wp, (Hs, Hs), dtype=jnp.float32) * 0.05
    bps = jax.random.normal(k_bp, (Hs,), dtype=jnp.float32) * 0.05
    wcs = jax.random.normal(k_wc, (Hs, C), dtype=jnp.float32) * 0.05
    bcs = jax.random.normal(k_bc, (C,), dtype=jnp.float32) * 0.05
    refs = reference_forward(xs, wps, bps, wcs, bcs)
    small = distinguish_forward(xs, wps, bps, wcs, bcs, force_pallas=True)
    small = jax.block_until_ready(small)
    assert small.shape == (Bs, C)
    assert jnp.allclose(small, refs, atol=1e-4, rtol=1e-4), "fallback mismatch"

    # 4) Tiny-shape dispatcher routes to the fused XLA expression.
    xla_path = distinguish_forward(xs, wps, bps, wcs, bcs)
    xla_path = jax.block_until_ready(xla_path)
    assert jnp.allclose(xla_path, refs, atol=1e-5, rtol=1e-5), "dispatch mismatch"

    print("KERNEL_OK")
</pallas_src>

<mosaic_0001>
module attributes {stable_mosaic.version = 11 : i64} {
  func.func @_distinguish_kernel(%arg0: i32, %arg1: memref<8x128xf32, #tpu.memory_space<vmem>>, %arg2: memref<128x128xf32, #tpu.memory_space<vmem>>, %arg3: memref<1x128xf32, #tpu.memory_space<vmem>>, %arg4: memref<128x128xf32, #tpu.memory_space<vmem>>, %arg5: memref<1x128xf32, #tpu.memory_space<vmem>>, %arg6: memref<8x128xf32, #tpu.memory_space<vmem>>) attributes {dimension_semantics = [#tpu.dimension_semantics<parallel>], iteration_bounds = array<i64: 2>, scalar_prefetch = 0 : i64, scratch_operands = 0 : i64, tpu.core_type = #tpu.core_type<tc>, window_params = [{transform_indices = @transform_0, window_bounds = array<i64: 8, 128>}, {pipeline_mode = #tpu.pipeline_mode<synchronous>, transform_indices = @transform_1, window_bounds = array<i64: 128, 128>}, {pipeline_mode = #tpu.pipeline_mode<synchronous>, transform_indices = @transform_2, window_bounds = array<i64: 1, 128>}, {pipeline_mode = #tpu.pipeline_mode<synchronous>, transform_indices = @transform_3, window_bounds = array<i64: 128, 128>}, {pipeline_mode = #tpu.pipeline_mode<synchronous>, transform_indices = @transform_4, window_bounds = array<i64: 1, 128>}, {transform_indices = @transform_5, window_bounds = array<i64: 8, 128>}]} {
    %c0 = arith.constant 0 : index
    %c0_0 = arith.constant 0 : index
    %0 = vector.load %arg1[%c0, %c0_0] : memref<8x128xf32, #tpu.memory_space<vmem>>, vector<8x128xf32>
    %c0_1 = arith.constant 0 : index
    %c0_2 = arith.constant 0 : index
    %1 = vector.load %arg2[%c0_1, %c0_2] : memref<128x128xf32, #tpu.memory_space<vmem>>, vector<128x128xf32>
    %cst = arith.constant dense<0.000000e+00> : vector<8x128xf32>
    %2 = tpu.matmul %0, %1, %cst {dimension_numbers = #tpu.dot_dimension_numbers<[1], [0], [0], [1], [0, 0, 1, 1], [], []>} : vector<8x128xf32>, vector<128x128xf32>, vector<8x128xf32> -> vector<8x128xf32>
    %c0_3 = arith.constant 0 : index
    %c0_4 = arith.constant 0 : index
    %3 = vector.load %arg3[%c0_3, %c0_4] : memref<1x128xf32, #tpu.memory_space<vmem>>, vector<1x128xf32>
    %4 = vector.broadcast %3 : vector<1x128xf32> to vector<8x128xf32>
    %5 = arith.addf %2, %4 : vector<8x128xf32>
    %6 = math.tanh %5 : vector<8x128xf32>
    %c0_5 = arith.constant 0 : index
    %c0_6 = arith.constant 0 : index
    %7 = vector.load %arg4[%c0_5, %c0_6] : memref<128x128xf32, #tpu.memory_space<vmem>>, vector<128x128xf32>
    %cst_7 = arith.constant dense<0.000000e+00> : vector<8x128xf32>
    %8 = tpu.matmul %6, %7, %cst_7 {dimension_numbers = #tpu.dot_dimension_numbers<[1], [0], [0], [1], [0, 0, 1, 1], [], []>} : vector<8x128xf32>, vector<128x128xf32>, vector<8x128xf32> -> vector<8x128xf32>
    %c0_8 = arith.constant 0 : index
    %c0_9 = arith.constant 0 : index
    %9 = vector.load %arg5[%c0_8, %c0_9] : memref<1x128xf32, #tpu.memory_space<vmem>>, vector<1x128xf32>
    %10 = vector.broadcast %9 : vector<1x128xf32> to vector<8x128xf32>
    %11 = arith.addf %8, %10 : vector<8x128xf32>
    %c0_10 = arith.constant 0 : index
    %c0_11 = arith.constant 0 : index
    %12 = vector.load %arg6[%c0_10, %c0_11] : memref<8x128xf32, #tpu.memory_space<vmem>>, vector<8x128xf32>
    tpu.vector_store %arg6[%c0_10, %c0_11], %11 {strides = array<i32>} : memref<8x128xf32, #tpu.memory_space<vmem>>, vector<8x128xf32>,
    return
  }
  func.func @transform_0(%arg0: i32) -> (i32, i32) {
    %c0_i32 = arith.constant 0 : i32
    %c0_i32_0 = arith.constant 0 : i32
    return %arg0, %c0_i32 : i32, i32
  }
  func.func @transform_1(%arg0: i32) -> (i32, i32) {
    %c0_i32 = arith.constant 0 : i32
    %c0_i32_0 = arith.constant 0 : i32
    %c0_i32_1 = arith.constant 0 : i32
    return %c0_i32, %c0_i32_0 : i32, i32
  }
  func.func @transform_2(%arg0: i32) -> (i32, i32) {
    %c0_i32 = arith.constant 0 : i32
    %c0_i32_0 = arith.constant 0 : i32
    %c0_i32_1 = arith.constant 0 : i32
    return %c0_i32, %c0_i32_0 : i32, i32
  }
  func.func @transform_3(%arg0: i32) -> (i32, i32) {
    %c0_i32 = arith.constant 0 : i32
    %c0_i32_0 = arith.constant 0 : i32
    %c0_i32_1 = arith.constant 0 : i32
    return %c0_i32, %c0_i32_0 : i32, i32
  }
  func.func @transform_4(%arg0: i32) -> (i32, i32) {
    %c0_i32 = arith.constant 0 : i32
    %c0_i32_0 = arith.constant 0 : i32
    %c0_i32_1 = arith.constant 0 : i32
    return %c0_i32, %c0_i32_0 : i32, i32
  }
  func.func @transform_5(%arg0: i32) -> (i32, i32) {
    %c0_i32 = arith.constant 0 : i32
    %c0_i32_0 = arith.constant 0 : i32
    return %arg0, %c0_i32 : i32, i32
  }
}

</mosaic_0001>

<llo_original>
// kernel: tpu_custom_call.1
$region0: #{tpu_custom_call.1}
  #allocation0 [shape = 'u32[]', space=smem, size = 0x4, offset = 0x4, fixed_abs, tag = 'smem constant byte address 0x4 - core index']
  #allocation1 [shape = 'u32[144,128]{1,0:T(1,128)}', space=vmem, size = 0x12000, scoped, tag = 'internal scratch']
  %s0 = inlined_call_operand.hbm [shape: f32[16,1024], index: 0, kind: input, shape index: {}]
  %s1 = inlined_call_operand.hbm [shape: f32[128,128], index: 1, kind: input, shape index: {}]
  %s2 = inlined_call_operand.vmem [shape: f32[1,128], index: 2, kind: input, shape index: {}]
  %s3 = inlined_call_operand.hbm [shape: f32[128,128], index: 3, kind: input, shape index: {}]
  %s4 = inlined_call_operand.vmem [shape: f32[1,128], index: 4, kind: input, shape index: {}]
  %s5 = inlined_call_operand.hbm [shape: f32[16,128], index: 5, kind: output, shape index: {}]
  %s6 = sld [smem:[#allocation0]]
  $region65: #{tpu_custom_call.1} parent=0
    _
  %s8 = ssub.s32 1, %s6
  %s9 = scalar_select 0, %s8, %s6
  $region1: #{tpu_custom_call.1} parent=0
    #allocation2 [shape = 'u8[8192]{0}', space=vmem, size = 0x2000, scoped, tag = 'input window, operand 0']
    #allocation3 [shape = 's32[2]{0}', space=sflag, size = 0x8, scoped, tag = 'scoped memory for tpu_custom_call.1']
    #allocation4 [shape = 's32[2]{0}', space=sflag, size = 0x8, scoped, tag = 'scoped memory for tpu_custom_call.1']
    #allocation5 [shape = 'u8[65536]{0}', space=vmem, size = 0x10000, scoped, tag = 'input window, operand 1, single buffered']
    #allocation6 [shape = 's32[1]{0}', space=sflag, size = 0x4, scoped, tag = 'scoped memory for tpu_custom_call.1']
    #allocation7 [shape = 'u8[65536]{0}', space=vmem, size = 0x10000, scoped, tag = 'input window, operand 3, single buffered']
    #allocation8 [shape = 'u8[8192]{0}', space=vmem, size = 0x2000, scoped, tag = 'output window, operand 0']
    %10 = vsyncpa [#allocation3], 0
    %s11 = scalar_lea.sflag [#allocation3], 1
    %12 = vsyncpa %s11, 0
    %13 = vsyncpa [#allocation6], 0
    %14 = vsyncpa [#allocation4], 0
    %s15 = scalar_lea.sflag [#allocation4], 1
    %16 = vsyncpa %s15, 0
    loop: start=0, step=1, limit=4
    $region2: #{tpu_custom_call.1} parent=1 // loop_pre_header
      _
    $region3: #{tpu_custom_call.1} parent=1 // loop_header
      %s18 = sphi 0, %s22
      %p19 = scmp.ge.s32.totalorder %s18, 4
      %s28 = sphi 0, %s30
      %s31 = sphi 0, %s28
      %s32 = sphi 0, %s31
      %s48 = sphi 0, %s32
      %s52 = sphi 0, %s52
      %s54 = sphi 0, %s52
      %s55 = sphi 0, %s54
      %s69 = sphi 0, %s55
      %s73 = sphi 0, %s73
      %s75 = sphi 0, %s73
      %s76 = sphi 0, %s75
      %s90 = sphi 0, %s76
      %s94 = sphi 0, %s94
      %s96 = sphi 0, %s94
      %s97 = sphi 0, %s96
      %s111 = sphi 0, %s97
      %s115 = sphi 0, %s115
      %s117 = sphi 0, %s115
      %s118 = sphi 0, %s117
      %s132 = sphi 0, %s118
      %s138 = sphi 0, %s140
      %s141 = sphi 0, %s138
      %s142 = sphi 0, %s141
      %s158 = sphi 0, %s142
    $region4: #{tpu_custom_call.1} parent=1 // loop_header_branch
      %21 = sbr.rel (%p19) target = $region8
    $region5: #{tpu_custom_call.1} parent=1 // loop_body
      %s23 = ssub.s32 %s18, 1
      %s24 = ssub.s32 %s18, 2
      %s25 = sadd.s32 %s18, 1
      %s26 = ssub.s32 %s18, %s25
      %p27 = scmp.eq.s32.totalorder %s26, 0
      %s29 = sadd.s32 %s28, 1
      %s30 = scalar_select %p27, %s28, %s29
      %p33 = pneg %p27
      %p34 = scmp.eq.s32.totalorder %s18, 1
      %p35 = por %p33, %p34
      %p36 = scmp.ne.s32.totalorder %s28, %s31
      %p37 = scmp.eq.s32.totalorder %s18, 0
      %p38 = por %p36, %p37
      %p39 = scmp.ne.s32.totalorder %s28, %s31
      %p40 = scmp.eq.s32.totalorder %s23, 1
      %p41 = por %p39, %p40
      %p42 = scmp.ne.s32.totalorder %s31, %s32
      %p43 = scmp.eq.s32.totalorder %s23, 0
      %p44 = por %p42, %p43
      %p45 = scmp.ne.s32.totalorder %s31, %s32
      %p46 = scmp.eq.s32.totalorder %s24, 1
      %p47 = por %p45, %p46
      %p49 = scmp.ne.s32.totalorder %s32, %s48
      %p50 = scmp.eq.s32.totalorder %s24, 0
      %p51 = por %p49, %p50
      %s53 = sadd.s32 %s52, 1
      %p56 = scmp.eq.s32.totalorder %s18, 1
      %p57 = scmp.ne.s32.totalorder %s52, %s54
      %p58 = scmp.eq.s32.totalorder %s18, 0
      %p59 = por %p57, %p58
      %p60 = scmp.ne.s32.totalorder %s52, %s54
      %p61 = scmp.eq.s32.totalorder %s23, 1
      %p62 = por %p60, %p61
      %p63 = scmp.ne.s32.totalorder %s54, %s55
      %p64 = scmp.eq.s32.totalorder %s23, 0
      %p65 = por %p63, %p64
      %p66 = scmp.ne.s32.totalorder %s54, %s55
      %p67 = scmp.eq.s32.totalorder %s24, 1
      %p68 = por %p66, %p67
      %p70 = scmp.ne.s32.totalorder %s55, %s69
      %p71 = scmp.eq.s32.totalorder %s24, 0
      %p72 = por %p70, %p71
      %s74 = sadd.s32 %s73, 1
      %p77 = scmp.eq.s32.totalorder %s18, 1
      %p78 = scmp.ne.s32.totalorder %s73, %s75
      %p79 = scmp.eq.s32.totalorder %s18, 0
      %p80 = por %p78, %p79
      %p81 = scmp.ne.s32.totalorder %s73, %s75
      %p82 = scmp.eq.s32.totalorder %s23, 1
      %p83 = por %p81, %p82
      %p84 = scmp.ne.s32.totalorder %s75, %s76
      %p85 = scmp.eq.s32.totalorder %s23, 0
      %p86 = por %p84, %p85
      %p87 = scmp.ne.s32.totalorder %s75, %s76
      %p88 = scmp.eq.s32.totalorder %s24, 1
      %p89 = por %p87, %p88
      %p91 = scmp.ne.s32.totalorder %s76, %s90
      %p92 = scmp.eq.s32.totalorder %s24, 0
      %p93 = por %p91, %p92
      %s95 = sadd.s32 %s94, 1
      %p98 = scmp.eq.s32.totalorder %s18, 1
      %p99 = scmp.ne.s32.totalorder %s94, %s96
      %p100 = scmp.eq.s32.totalorder %s18, 0
      %p101 = por %p99, %p100
      %p102 = scmp.ne.s32.totalorder %s94, %s96
      %p103 = scmp.eq.s32.totalorder %s23, 1
      %p104 = por %p102, %p103
      %p105 = scmp.ne.s32.totalorder %s96, %s97
      %p106 = scmp.eq.s32.totalorder %s23, 0
      %p107 = por %p105, %p106
      %p108 = scmp.ne.s32.totalorder %s96, %s97
      %p109 = scmp.eq.s32.totalorder %s24, 1
      %p110 = por %p108, %p109
      %p112 = scmp.ne.s32.totalorder %s97, %s111
      %p113 = scmp.eq.s32.totalorder %s24, 0
      %p114 = por %p112, %p113
      %s116 = sadd.s32 %s115, 1
      %p119 = scmp.eq.s32.totalorder %s18, 1
      %p120 = scmp.ne.s32.totalorder %s115, %s117
      %p121 = scmp.eq.s32.totalorder %s18, 0
      %p122 = por %p120, %p121
      %p123 = scmp.ne.s32.totalorder %s115, %s117
      %p124 = scmp.eq.s32.totalorder %s23, 1
      %p125 = por %p123, %p124
      %p126 = scmp.ne.s32.totalorder %s117, %s118
      %p127 = scmp.eq.s32.totalorder %s23, 0
      %p128 = por %p126, %p127
      %p129 = scmp.ne.s32.totalorder %s117, %s118
      %p130 = scmp.eq.s32.totalorder %s24, 1
      %p131 = por %p129, %p130
      %p133 = scmp.ne.s32.totalorder %s118, %s132
      %p134 = scmp.eq.s32.totalorder %s24, 0
      %p135 = por %p133, %p134
      %s136 = ssub.s32 %s18, %s25
      %p137 = scmp.eq.s32.totalorder %s136, 0
      %s139 = sadd.s32 %s138, 1
      %s140 = scalar_select %p137, %s138, %s139
      %p143 = pneg %p137
      %p144 = scmp.eq.s32.totalorder %s18, 1
      %p145 = por %p143, %p144
      %p146 = scmp.ne.s32.totalorder %s138, %s141
      %p147 = scmp.eq.s32.totalorder %s18, 0
      %p148 = por %p146, %p147
      %p149 = scmp.ne.s32.totalorder %s138, %s141
      %p150 = scmp.eq.s32.totalorder %s23, 1
      %p151 = por %p149, %p150
      %p152 = scmp.ne.s32.totalorder %s141, %s142
      %p153 = scmp.eq.s32.totalorder %s23, 0
      %p154 = por %p152, %p153
      %p155 = scmp.ne.s32.totalorder %s141, %s142
      %p156 = scmp.eq.s32.totalorder %s24, 1
      %p157 = por %p155, %p156
      %p159 = scmp.ne.s32.totalorder %s142, %s158
      %p160 = scmp.eq.s32.totalorder %s24, 0
      %p161 = por %p159, %p160
      %p162 = scmp.le.s32.totalorder 1, %s18
      %p163 = scmp.lt.s32.totalorder %s18, 3
      %p164 = pnand %p162, %p163
      %p165 = pneg %p164
      // Predicated region
      $region9: #{tpu_custom_call.1} parent=5 // pred_check
        _
      $region10: #{tpu_custom_call.1} parent=5 // pred_check_branch
        %167 = sbr.rel (%p164) target = $region12
      $region11: #{tpu_custom_call.1} parent=5 // pred_region
        %s168 = ssub.s32 %s18, 1
        // Predicated region
        $region13: #{tpu_custom_call.1} parent=11 // pred_check
          %p169 = pneg %p65
        $region14: #{tpu_custom_call.1} parent=11 // pred_check_branch
          %171 = sbr.rel (%p169) target = $region16
        $region15: #{tpu_custom_call.1} parent=11 // pred_region
          %s173 = ssub.s32 2048, 2048
          %174 = vsyncadd [#allocation6], %s173
          %s175 = sshll.u32 [#allocation5], 4
          %s176 = int_to_ptr.vmem [resolvable:$true] %s175
          %181 = dma.hbm_to_vmem [thread:$0]  %s1, 2048, %s176, [#allocation6], 128, 128, 8
        $region16: #{tpu_custom_call.1} parent=11 // pred_fallthru
          _
        // Predicated region
        $region17: #{tpu_custom_call.1} parent=11 // pred_check
          %p182 = pneg %p86
        $region18: #{tpu_custom_call.1} parent=11 // pred_check_branch
          %184 = sbr.rel (%p182) target = $region20
        $region19: #{tpu_custom_call.1} parent=11 // pred_region
          _
        $region20: #{tpu_custom_call.1} parent=11 // pred_fallthru
          _
        // Predicated region
        $region21: #{tpu_custom_call.1} parent=11 // pred_check
          %p185 = pneg %p107
        $region22: #{tpu_custom_call.1} parent=11 // pred_check_branch
          %187 = sbr.rel (%p185) target = $region24
        $region23: #{tpu_custom_call.1} parent=11 // pred_region
          %s189 = ssub.s32 2048, 2048
          %190 = vsyncadd [#allocation6], %s189
          %s191 = sshll.u32 [#allocation7], 4
          %s192 = int_to_ptr.vmem [resolvable:$true] %s191
          %197 = dma.hbm_to_vmem [thread:$0]  %s3, 2048, %s192, [#allocation6], 128, 128, 8
        $region24: #{tpu_custom_call.1} parent=11 // pred_fallthru
          _
        // Predicated region
        $region25: #{tpu_custom_call.1} parent=11 // pred_check
          %p198 = pneg %p128
        $region26: #{tpu_custom_call.1} parent=11 // pred_check_branch
          %200 = sbr.rel (%p198) target = $region28
        $region27: #{tpu_custom_call.1} parent=11 // pred_region
          _
        $region28: #{tpu_custom_call.1} parent=11 // pred_fallthru
          _
      $region12: #{tpu_custom_call.1} parent=5 // pred_fallthru
        _
      %p201 = scmp.lt.s32.totalorder %s18, 2
      // Predicated region
      $region29: #{tpu_custom_call.1} parent=5 // pred_check
        %p202 = pneg %p201
      $region30: #{tpu_custom_call.1} parent=5 // pred_check_branch
        %204 = sbr.rel (%p202) target = $region32
      $region31: #{tpu_custom_call.1} parent=5 // pred_region
        // Predicated region
        $region33: #{tpu_custom_call.1} parent=31 // pred_check
          %p205 = pneg %p38
        $region34: #{tpu_custom_call.1} parent=31 // pred_check_branch
          %207 = sbr.rel (%p205) target = $region36
        $region35: #{tpu_custom_call.1} parent=31 // pred_region
          %s208 = sand.u32 %s28, 1
          %s209 = scalar_lea.sflag [#allocation3], %s208
          %s210 = sand.u32 %s28, 1
          %s211 = smul.addr %s210, 8
          %s212 = scalar_lea.vmem [#allocation2], %s211
          %s214 = ssub.s32 128, 128
          %215 = vsyncadd %s209, %s214
          %s216 = smul.addr %s18, 8
          %s217 = smul.addr %s216, 128
          %s218 = scalar_lea.hbm %s0, %s217
          %s220 = sshll.u32 %s212, 4
          %s221 = int_to_ptr.vmem [resolvable:$true] %s220
          %223 = dma.hbm_to_vmem [thread:$0]  %s218, 128, %s221, %s209
        $region36: #{tpu_custom_call.1} parent=31 // pred_fallthru
          _
      $region32: #{tpu_custom_call.1} parent=5 // pred_fallthru
        _
      %p224 = scmp.le.s32.totalorder 1, %s18
      %p225 = scmp.lt.s32.totalorder %s18, 3
      %p226 = pnand %p224, %p225
      %p227 = pneg %p226
      // Predicated region
      $region37: #{tpu_custom_call.1} parent=5 // pred_check
        _
      $region38: #{tpu_custom_call.1} parent=5 // pred_check_branch
        %229 = sbr.rel (%p226) target = $region40
      $region39: #{tpu_custom_call.1} parent=5 // pred_region
        %s230 = ssub.s32 %s18, 1
        %s231 = sand.u32 %s31, 1
        %s232 = scalar_lea.sflag [#allocation3], %s231
        %s233 = sand.u32 %s31, 1
        %s234 = smul.addr %s233, 8
        %s235 = scalar_lea.vmem [#allocation2], %s234
        // Predicated region
        $region41: #{tpu_custom_call.1} parent=39 // pred_check
          %p236 = pneg %p44
        $region42: #{tpu_custom_call.1} parent=39 // pred_check_branch
          %238 = sbr.rel (%p236) target = $region44
        $region43: #{tpu_custom_call.1} parent=39 // pred_region
          %239 = dma.done %s232, 128
        $region44: #{tpu_custom_call.1} parent=39 // pred_fallthru
          _
        // Predicated region
        $region45: #{tpu_custom_call.1} parent=39 // pred_check
          %p240 = pneg %p65
        $region46: #{tpu_custom_call.1} parent=39 // pred_check_branch
          %242 = sbr.rel (%p240) target = $region48
        $region47: #{tpu_custom_call.1} parent=39 // pred_region
          %243 = dma.done [#allocation6], 2048
        $region48: #{tpu_custom_call.1} parent=39 // pred_fallthru
          _
        // Predicated region
        $region49: #{tpu_custom_call.1} parent=39 // pred_check
          %p244 = pneg %p107
        $region50: #{tpu_custom_call.1} parent=39 // pred_check_branch
          %246 = sbr.rel (%p244) target = $region52
        $region51: #{tpu_custom_call.1} parent=39 // pred_region
          %247 = dma.done [#allocation6], 2048
        $region52: #{tpu_custom_call.1} parent=39 // pred_fallthru
          _
        %s248 = sand.u32 %s31, 1
        %s249 = scalar_lea.sflag [#allocation3], %s248
        %s250 = sand.u32 %s31, 1
        %s251 = smul.addr %s250, 8
        %s252 = scalar_lea.vmem [#allocation2], %s251
        %p253 = pneg %p44
        %p254 = pneg %p41
        %p255 = pneg %p65
        %p256 = pneg %p62
        %p257 = pneg %p86
        %p258 = pneg %p83
        %p259 = pneg %p107
        %p260 = pneg %p104
        %p261 = pneg %p128
        %p262 = pneg %p125
        %p263 = pneg %p154
        %p264 = pneg %p151
        %s265 = sand.u32 %s141, 1
        %s266 = scalar_lea.sflag [#allocation4], %s265
        %s267 = sand.u32 %s141, 1
        %s268 = smul.addr %s267, 8
        %s269 = scalar_lea.vmem [#allocation8], %s268
        %v270 = vld [vmem:[%s235] sm:$0xff]
        %v271 = vld [vmem:[#allocation5] sm:$0xff]
        %v272 = vld [vmem:[#allocation5 + $0x8] sm:$0xff]
        %v273 = vld [vmem:[#allocation5 + $0x10] sm:$0xff]
        %v274 = vld [vmem:[#allocation5 + $0x18] sm:$0xff]
        %v275 = vld [vmem:[#allocation5 + $0x20] sm:$0xff]
        %v276 = vld [vmem:[#allocation5 + $0x28] sm:$0xff]
        %v277 = vld [vmem:[#allocation5 + $0x30] sm:$0xff]
        %v278 = vld [vmem:[#allocation5 + $0x38] sm:$0xff]
        %v279 = vld [vmem:[#allocation5 + $0x40] sm:$0xff]
        %v280 = vld [vmem:[#allocation5 + $0x48] sm:$0xff]
        %v281 = vld [vmem:[#allocation5 + $0x50] sm:$0xff]
        %v282 = vld [vmem:[#allocation5 + $0x58] sm:$0xff]
        %v283 = vld [vmem:[#allocation5 + $0x60] sm:$0xff]
        %v284 = vld [vmem:[#allocation5 + $0x68] sm:$0xff]
        %v285 = vld [vmem:[#allocation5 + $0x70] sm:$0xff]
        %v286 = vld [vmem:[#allocation5 + $0x78] sm:$0xff]
        %v287 = vld [vmem:[%s2] sm:$0x1]
        %v289 = vlaneseq
        %v290 = vshrl.u32 %v289, 7
        %v291 = vsub.s32 0, %v290
        %v292 = vrot.slane %v287, %v291
        %294 = vmatprep.subr.mxu0 0.0
        %295 = vmatpush1.msra.mxu0 %v271
        %296 = vmatprep.subr.mxu0 0.0
        %297 = vmatpush1.msra.mxu0 %v272
        %298 = vmatprep.subr.mxu0 0.0
        %299 = vmatpush1.msra.mxu0 %v273
        %300 = vmatprep.subr.mxu0 0.0
        %301 = vmatpush1.msra.mxu0 %v274
        %302 = vmatprep.subr.mxu0 0.0
        %303 = vmatpush1.msra.mxu0 %v275
        %304 = vmatprep.subr.mxu0 0.0
        %305 = vmatpush1.msra.mxu0 %v276
        %306 = vmatprep.subr.mxu0 0.0
        %307 = vmatpush1.msra.mxu0 %v277
        %308 = vmatprep.subr.mxu0 0.0
        %309 = vmatpush1.msra.mxu0 %v278
        %310 = vmatprep.subr.mxu0 0.0
        %311 = vmatpush1.msra.mxu0 %v279
        %312 = vmatprep.subr.mxu0 0.0
        %313 = vmatpush1.msra.mxu0 %v280
        %314 = vmatprep.subr.mxu0 0.0
        %315 = vmatpush1.msra.mxu0 %v281
        %316 = vmatprep.subr.mxu0 0.0
        %317 = vmatpush1.msra.mxu0 %v282
        %318 = vmatprep.subr.mxu0 0.0
        %319 = vmatpush1.msra.mxu0 %v283
        %320 = vmatprep.subr.mxu0 0.0
        %321 = vmatpush1.msra.mxu0 %v284
        %322 = vmatprep.subr.mxu0 0.0
        %323 = vmatpush1.msra.mxu0 %v285
        %324 = vmatprep.subr.mxu0 0.0
        %325 = vmatpush1.msra.mxu0 %v286
        %326 = vmatprep.subr.mxu0 0.0
        %327 = vmatpush1.msra.mxu0 0.0
        %328 = vmatprep.subr.mxu0 0.0
        %329 = vmatpush1.msra.mxu0 0.0
        %330 = vmatprep.subr.mxu0 0.0
        %331 = vmatpush1.msra.mxu0 0.0
        %332 = vmatprep.subr.mxu0 0.0
        %333 = vmatpush1.msra.mxu0 0.0
        %334 = vmatprep.subr.mxu0 0.0
        %335 = vmatpush1.msra.mxu0 0.0
        %336 = vmatprep.subr.mxu0 0.0
        %337 = vmatpush1.msra.mxu0 0.0
        %338 = vmatprep.subr.mxu0 0.0
        %339 = vmatpush1.msra.mxu0 0.0
        %340 = vmatprep.subr.mxu0 0.0
        %341 = vmatpush1.msra.mxu0 0.0
        %342 = vmatprep.subr.mxu0 0.0
        %343 = vmatpush1.msra.mxu0 0.0
        %344 = vmatprep.subr.mxu0 0.0
        %345 = vmatpush1.msra.mxu0 0.0
        %346 = vmatprep.subr.mxu0 0.0
        %347 = vmatpush1.msra.mxu0 0.0
        %348 = vmatprep.subr.mxu0 0.0
        %349 = vmatpush1.msra.mxu0 0.0
        %350 = vmatprep.subr.mxu0 0.0
        %351 = vmatpush1.msra.mxu0 0.0
        %352 = vmatprep.subr.mxu0 0.0
        %353 = vmatpush1.msra.mxu0 0.0
        %354 = vmatprep.subr.mxu0 0.0
        %355 = vmatpush1.msra.mxu0 0.0
        %356 = vmatprep.subr.mxu0 0.0
        %357 = vmatpush1.msra.mxu0 0.0
        %358 = vmatprep.mubr.f32.mxu0 0.0
        %359 = vmatmul.mubr.f32.gmra.mrb[0].mxu0 %v270
        %v360 = vpop.f32.mrb[0].mxu0
        %v361 = vadd.f32 %v292, %v360
        %v362 = vpop.f32.mrb[0].mxu0
        %363 = vdwg.mxu0
        %v364 = vtanh.pop %v361
        %v365 = vld [vmem:[#allocation7] sm:$0xff]
        %v366 = vld [vmem:[#allocation7 + $0x8] sm:$0xff]
        %v367 = vld [vmem:[#allocation7 + $0x10] sm:$0xff]
        %v368 = vld [vmem:[#allocation7 + $0x18] sm:$0xff]
        %v369 = vld [vmem:[#allocation7 + $0x20] sm:$0xff]
        %v370 = vld [vmem:[#allocation7 + $0x28] sm:$0xff]
        %v371 = vld [vmem:[#allocation7 + $0x30] sm:$0xff]
        %v372 = vld [vmem:[#allocation7 + $0x38] sm:$0xff]
        %v373 = vld [vmem:[#allocation7 + $0x40] sm:$0xff]
        %v374 = vld [vmem:[#allocation7 + $0x48] sm:$0xff]
        %v375 = vld [vmem:[#allocation7 + $0x50] sm:$0xff]
        %v376 = vld [vmem:[#allocation7 + $0x58] sm:$0xff]
        %v377 = vld [vmem:[#allocation7 + $0x60] sm:$0xff]
        %v378 = vld [vmem:[#allocation7 + $0x68] sm:$0xff]
        %v379 = vld [vmem:[#allocation7 + $0x70] sm:$0xff]
        %v380 = vld [vmem:[#allocation7 + $0x78] sm:$0xff]
        %v381 = vld [vmem:[%s4] sm:$0x1]
        %v383 = vlaneseq
        %v384 = vshrl.u32 %v383, 7
        %v385 = vsub.s32 0, %v384
        %v386 = vrot.slane %v381, %v385
        %388 = vmatprep.subr.mxu0 0.0
        %389 = vmatpush1.msra.mxu0 %v365
        %390 = vmatprep.subr.mxu0 0.0
        %391 = vmatpush1.msra.mxu0 %v366
        %392 = vmatprep.subr.mxu0 0.0
        %393 = vmatpush1.msra.mxu0 %v367
        %394 = vmatprep.subr.mxu0 0.0
        %395 = vmatpush1.msra.mxu0 %v368
        %396 = vmatprep.subr.mxu0 0.0
        %397 = vmatpush1.msra.mxu0 %v369
        %398 = vmatprep.subr.mxu0 0.0
        %399 = vmatpush1.msra.mxu0 %v370
        %400 = vmatprep.subr.mxu0 0.0
        %401 = vmatpush1.msra.mxu0 %v371
        %402 = vmatprep.subr.mxu0 0.0
        %403 = vmatpush1.msra.mxu0 %v372
        %404 = vmatprep.subr.mxu0 0.0
        %405 = vmatpush1.msra.mxu0 %v373
        %406 = vmatprep.subr.mxu0 0.0
        %407 = vmatpush1.msra.mxu0 %v374
        %408 = vmatprep.subr.mxu0 0.0
        %409 = vmatpush1.msra.mxu0 %v375
        %410 = vmatprep.subr.mxu0 0.0
        %411 = vmatpush1.msra.mxu0 %v376
        %412 = vmatprep.subr.mxu0 0.0
        %413 = vmatpush1.msra.mxu0 %v377
        %414 = vmatprep.subr.mxu0 0.0
        %415 = vmatpush1.msra.mxu0 %v378
        %416 = vmatprep.subr.mxu0 0.0
        %417 = vmatpush1.msra.mxu0 %v379
        %418 = vmatprep.subr.mxu0 0.0
        %419 = vmatpush1.msra.mxu0 %v380
        %420 = vmatprep.subr.mxu0 0.0
        %421 = vmatpush1.msra.mxu0 0.0
        %422 = vmatprep.subr.mxu0 0.0
        %423 = vmatpush1.msra.mxu0 0.0
        %424 = vmatprep.subr.mxu0 0.0
        %425 = vmatpush1.msra.mxu0 0.0
        %426 = vmatprep.subr.mxu0 0.0
        %427 = vmatpush1.msra.mxu0 0.0
        %428 = vmatprep.subr.mxu0 0.0
        %429 = vmatpush1.msra.mxu0 0.0
        %430 = vmatprep.subr.mxu0 0.0
        %431 = vmatpush1.msra.mxu0 0.0
        %432 = vmatprep.subr.mxu0 0.0
        %433 = vmatpush1.msra.mxu0 0.0
        %434 = vmatprep.subr.mxu0 0.0
        %435 = vmatpush1.msra.mxu0 0.0
        %436 = vmatprep.subr.mxu0 0.0
        %437 = vmatpush1.msra.mxu0 0.0
        %438 = vmatprep.subr.mxu0 0.0
        %439 = vmatpush1.msra.mxu0 0.0
        %440 = vmatprep.subr.mxu0 0.0
        %441 = vmatpush1.msra.mxu0 0.0
        %442 = vmatprep.subr.mxu0 0.0
        %443 = vmatpush1.msra.mxu0 0.0
        %444 = vmatprep.subr.mxu0 0.0
        %445 = vmatpush1.msra.mxu0 0.0
        %446 = vmatprep.subr.mxu0 0.0
        %447 = vmatpush1.msra.mxu0 0.0
        %448 = vmatprep.subr.mxu0 0.0
        %449 = vmatpush1.msra.mxu0 0.0
        %450 = vmatprep.subr.mxu0 0.0
        %451 = vmatpush1.msra.mxu0 0.0
        %452 = vmatprep.mubr.f32.mxu0 0.0
        %453 = vmatmul.mubr.f32.gmra.mrb[0].mxu0 %v364
        %v454 = vpop.f32.mrb[0].mxu0
        %v455 = vadd.f32 %v386, %v454
        %v456 = vpop.f32.mrb[0].mxu0
        %457 = vdwg.mxu0
        %458 = vst [vmem:[%s269] sm:$0xff] %v455
        %s459 = sand.u32 %s141, 1
        %s460 = scalar_lea.sflag [#allocation4], %s459
        %s461 = sand.u32 %s141, 1
        %s462 = smul.addr %s461, 8
        %s463 = scalar_lea.vmem [#allocation8], %s462
        // Predicated region
        $region53: #{tpu_custom_call.1} parent=39 // pred_check
          %p464 = pneg %p151
        $region54: #{tpu_custom_call.1} parent=39 // pred_check_branch
          %466 = sbr.rel (%p464) target = $region56
        $region55: #{tpu_custom_call.1} parent=39 // pred_region
          %s468 = ssub.s32 128, 128
          %469 = vsyncadd %s460, %s468
          %s470 = smul.addr %s23, 128
          %s471 = scalar_lea.hbm %s5, %s470
          %s473 = sshll.u32 %s463, 4
          %s474 = int_to_ptr.vmem [resolvable:$true] %s473
          %476 = dma.vmem_to_hbm [thread:$0]  %s474, 128, %s471, %s460
        $region56: #{tpu_custom_call.1} parent=39 // pred_fallthru
          _
      $region40: #{tpu_custom_call.1} parent=5 // pred_fallthru
        _
      %p477 = scmp.le.s32.totalorder 2, %s18
      // Predicated region
      $region57: #{tpu_custom_call.1} parent=5 // pred_check
        %p478 = pneg %p477
      $region58: #{tpu_custom_call.1} parent=5 // pred_check_branch
        %480 = sbr.rel (%p478) target = $region60
      $region59: #{tpu_custom_call.1} parent=5 // pred_region
        %s481 = ssub.s32 %s18, 2
        // Predicated region
        $region61: #{tpu_custom_call.1} parent=59 // pred_check
          %p482 = pneg %p157
        $region62: #{tpu_custom_call.1} parent=59 // pred_check_branch
          %484 = sbr.rel (%p482) target = $region64
        $region63: #{tpu_custom_call.1} parent=59 // pred_region
          %s485 = sand.u32 %s142, 1
          %s486 = scalar_lea.sflag [#allocation4], %s485
          %s487 = sand.u32 %s142, 1
          %s488 = smul.addr %s487, 8
          %s489 = scalar_lea.vmem [#allocation8], %s488
          %490 = dma.done %s486, 128
        $region64: #{tpu_custom_call.1} parent=59 // pred_fallthru
          _
      $region60: #{tpu_custom_call.1} parent=5 // pred_fallthru
        _
    $region6: #{tpu_custom_call.1} parent=1 // loop_footer
      %s22 = sadd.s32 1, %s18
    $region7: #{tpu_custom_call.1} parent=1 // loop_footer_branch
      %17 = sbr.rel target = $region3
    $region8: #{tpu_custom_call.1} parent=1 // loop_exit
      _
    %491 = vsyncpa [#allocation3], 1
    %s492 = scalar_lea.sflag [#allocation3], 1
    %493 = vsyncpa %s492, 1
    %494 = vsyncpa [#allocation6], 1
    %495 = vsyncpa [#allocation4], 1
    %s496 = scalar_lea.sflag [#allocation4], 1
    %497 = vsyncpa %s496, 1

</llo_original>
